<compile_context>
chip_gen: v5e
topology: v5e:2x2
jax: 0.10.0
libtpu: 0.0.40
codegen_flags: <defaults>
</compile_context>

<pallas_src>
import functools

import jax
import jax.numpy as jnp
from jax.experimental import pallas as pl
from jax.experimental.pallas import tpu as pltpu


# ---------------------------------------------------------------------------
# Tiling helper
# ---------------------------------------------------------------------------
def _batch_tile(batch, row_bytes, vmem_budget=12 << 20):
    """Pick (TB, grid_steps) so ~4 live copies of a (TB, C) tile fit in VMEM.

    (input + output, each double-buffered by the Pallas pipeline.)  Budget is
    conservative w.r.t. v7x's smaller 64 MiB VMEM / 32 MiB default scoped limit.
    """
    max_tb = max(1, vmem_budget // (4 * row_bytes))
    if batch <= max_tb:
        return batch, 1                      # one block covers the whole batch
    tb = max(8, (max_tb // 8) * 8)           # keep second-minor dim 8-aligned
    return tb, pl.cdiv(batch, tb)


# ---------------------------------------------------------------------------
# Kernels
# ---------------------------------------------------------------------------
def _rsoftmax_kernel(x_ref, o_ref, *, radix, cardinality, inner):
    # x_ref / o_ref: (TB, C) with C = cardinality * radix * inner
    #   input  channel order: (cardinality, radix, inner)
    #   output channel order: (radix, cardinality, inner)  == torch transpose+reshape
    x = x_ref[...].astype(jnp.float32)
    group = radix * inner
    out_chunks = [None] * (radix * cardinality)
    for g in range(cardinality):                       # small static unroll
        base = g * group
        cols = [x[:, base + r * inner: base + (r + 1) * inner]
                for r in range(radix)]                 # each (TB, inner)
        m = cols[0]
        for r in range(1, radix):
            m = jnp.maximum(m, cols[r])
        es = [jnp.exp(c - m) for c in cols]
        s = es[0]
        for r in range(1, radix):
            s = s + es[r]
        inv = pl.reciprocal(s, approx=True)            # EUP, not a VPU divide
        for r in range(radix):
            out_chunks[r * cardinality + g] = es[r] * inv
    # single lane-dense store of the whole (TB, C) tile, already in the
    # (radix, cardinality, inner) flattened order expected by torch
    o_ref[...] = jnp.concatenate(out_chunks, axis=-1).astype(o_ref.dtype)


def _sigmoid_kernel(x_ref, o_ref):
    x = x_ref[...].astype(jnp.float32)
    o_ref[...] = pl.reciprocal(1.0 + jnp.exp(-x), approx=True).astype(o_ref.dtype)


# ---------------------------------------------------------------------------
# Wrapper (module equivalent)
# ---------------------------------------------------------------------------
def rsoftmax(x, radix, cardinality):
    """JAX/Pallas equivalent of rSoftMax.forward.

    x: (B, C, 1, 1) or (B, C) like the PyTorch module's input.
    Returns:
      radix > 1 : (B, C) flattened attention weights (matches reshape(B, -1))
      radix == 1: same shape as x (elementwise sigmoid)
    """
    batch = x.shape[0]
    x2 = x.reshape(batch, -1)                      # free reshape, no data movement
    n = x2.shape[1]
    tb, steps = _batch_tile(batch, n * x2.dtype.itemsize)

    if radix > 1:
        assert n % (radix * cardinality) == 0
        inner = n // (radix * cardinality)
        kernel = functools.partial(_rsoftmax_kernel, radix=radix,
                                   cardinality=cardinality, inner=inner)
        out = pl.pallas_call(
            kernel,
            out_shape=jax.ShapeDtypeStruct((batch, n), x.dtype),
            grid=(steps,),
            in_specs=[pl.BlockSpec((tb, n), lambda b: (b, 0))],
            out_specs=pl.BlockSpec((tb, n), lambda b: (b, 0)),
            compiler_params=pltpu.CompilerParams(
                dimension_semantics=("parallel",)),
        )(x2)
        return out                                 # already torch's reshape(B, -1)
    else:
        out = pl.pallas_call(
            _sigmoid_kernel,
            out_shape=jax.ShapeDtypeStruct((batch, n), x.dtype),
            grid=(steps,),
            in_specs=[pl.BlockSpec((tb, n), lambda b: (b, 0))],
            out_specs=pl.BlockSpec((tb, n), lambda b: (b, 0)),
            compiler_params=pltpu.CompilerParams(
                dimension_semantics=("parallel",)),
        )(x2)
        return out.reshape(x.shape)


# ---------------------------------------------------------------------------
# Pure-JAX reference for verification
# ---------------------------------------------------------------------------
def rsoftmax_ref(x, radix, cardinality):
    batch = x.shape[0]
    if radix > 1:
        xr = x.reshape(batch, cardinality, radix, -1)
        xr = jnp.transpose(xr, (0, 2, 1, 3))
        xr = jax.nn.softmax(xr, axis=1)
        return xr.reshape(batch, -1)
    else:
        return jax.nn.sigmoid(x)


# ---------------------------------------------------------------------------
if __name__ == "__main__":
    key = jax.random.PRNGKey(0)

    # ---- radix > 1 case (softmax branch) -----------------------------------
    radix, cardinality = 2, 2
    inner = 64                               # channels per (card, radix) group
    C = radix * cardinality * inner          # 256 attention channels
    batch = 8
    x = jax.random.normal(key, (batch, C, 1, 1), dtype=jnp.float32)

    out = jax.block_until_ready(rsoftmax(x, radix, cardinality))
    ref = rsoftmax_ref(x, radix, cardinality)
    assert out.shape == (batch, C)
    # tolerance accounts for the approx (EUP) reciprocal in the normalize
    assert jnp.allclose(out, ref, atol=2e-3, rtol=2e-3), float(
        jnp.max(jnp.abs(out - ref)))

    # ---- radix == 1 case (sigmoid branch) ----------------------------------
    x1 = jax.random.normal(jax.random.PRNGKey(1), (batch, 32, 1, 1),
                           dtype=jnp.float32)
    out1 = jax.block_until_ready(rsoftmax(x1, radix=1, cardinality=1))
    ref1 = rsoftmax_ref(x1, 1, 1)
    assert out1.shape == x1.shape
    assert jnp.allclose(out1, ref1, atol=2e-3, rtol=2e-3)

    print("KERNEL_OK")
</pallas_src>

<mosaic_0001>
module attributes {stable_mosaic.version = 11 : i64} {
  func.func @_rsoftmax_kernel(%arg0: i32, %arg1: memref<8x256xf32, #tpu.memory_space<vmem>>, %arg2: memref<8x256xf32, #tpu.memory_space<vmem>>) attributes {dimension_semantics = [#tpu.dimension_semantics<parallel>], iteration_bounds = array<i64: 1>, scalar_prefetch = 0 : i64, scratch_operands = 0 : i64, tpu.core_type = #tpu.core_type<tc>, window_params = [{transform_indices = @transform_0, window_bounds = array<i64: 8, 256>}, {transform_indices = @transform_1, window_bounds = array<i64: 8, 256>}]} {
    %c0 = arith.constant 0 : index
    %c0_0 = arith.constant 0 : index
    %0 = vector.load %arg1[%c0, %c0_0] : memref<8x256xf32, #tpu.memory_space<vmem>>, vector<8x256xf32>
    %1 = vector.extract_strided_slice %0 {offsets = [0, 0], sizes = [8, 64], strides = [1, 1]} : vector<8x256xf32> to vector<8x64xf32>
    %2 = vector.extract_strided_slice %0 {offsets = [0, 64], sizes = [8, 64], strides = [1, 1]} : vector<8x256xf32> to vector<8x64xf32>
    %3 = arith.maximumf %1, %2 : vector<8x64xf32>
    %4 = arith.subf %1, %3 : vector<8x64xf32>
    %5 = math.exp %4 : vector<8x64xf32>
    %6 = arith.subf %2, %3 : vector<8x64xf32>
    %7 = math.exp %6 : vector<8x64xf32>
    %8 = arith.addf %5, %7 : vector<8x64xf32>
    %9 = tpu.reciprocal %8 {approx = true} : vector<8x64xf32> -> vector<8x64xf32>
    %10 = arith.mulf %5, %9 : vector<8x64xf32>
    %11 = arith.mulf %7, %9 : vector<8x64xf32>
    %12 = vector.extract_strided_slice %0 {offsets = [0, 128], sizes = [8, 64], strides = [1, 1]} : vector<8x256xf32> to vector<8x64xf32>
    %13 = vector.extract_strided_slice %0 {offsets = [0, 192], sizes = [8, 64], strides = [1, 1]} : vector<8x256xf32> to vector<8x64xf32>
    %14 = arith.maximumf %12, %13 : vector<8x64xf32>
    %15 = arith.subf %12, %14 : vector<8x64xf32>
    %16 = math.exp %15 : vector<8x64xf32>
    %17 = arith.subf %13, %14 : vector<8x64xf32>
    %18 = math.exp %17 : vector<8x64xf32>
    %19 = arith.addf %16, %18 : vector<8x64xf32>
    %20 = tpu.reciprocal %19 {approx = true} : vector<8x64xf32> -> vector<8x64xf32>
    %21 = arith.mulf %16, %20 : vector<8x64xf32>
    %22 = arith.mulf %18, %20 : vector<8x64xf32>
    %23 = tpu.concatenate %10, %21, %11, %22 in 1 : vector<8x64xf32>, vector<8x64xf32>, vector<8x64xf32>, vector<8x64xf32> -> vector<8x256xf32>
    %c0_1 = arith.constant 0 : index
    %c0_2 = arith.constant 0 : index
    %24 = vector.load %arg2[%c0_1, %c0_2] : memref<8x256xf32, #tpu.memory_space<vmem>>, vector<8x256xf32>
    tpu.vector_store %arg2[%c0_1, %c0_2], %23 {strides = array<i32>} : memref<8x256xf32, #tpu.memory_space<vmem>>, vector<8x256xf32>,
    return
  }
  func.func @transform_0(%arg0: i32) -> (i32, i32) {
    %c0_i32 = arith.constant 0 : i32
    %c0_i32_0 = arith.constant 0 : i32
    return %arg0, %c0_i32 : i32, i32
  }
  func.func @transform_1(%arg0: i32) -> (i32, i32) {
    %c0_i32 = arith.constant 0 : i32
    %c0_i32_0 = arith.constant 0 : i32
    return %arg0, %c0_i32 : i32, i32
  }
}

</mosaic_0001>

<llo_original>
// kernel: tpu_custom_call.1
$region0: #{tpu_custom_call.1}
  #allocation0 [shape = 'u32[]', space=smem, size = 0x4, offset = 0x4, fixed_abs, tag = 'smem constant byte address 0x4 - core index']
  #allocation1 [shape = 'u32[72,128]{1,0:T(1,128)}', space=vmem, size = 0x9000, scoped, tag = 'internal scratch']
  %s0 = inlined_call_operand.hbm [shape: f32[8,256], index: 0, kind: input, shape index: {}]
  %s1 = inlined_call_operand.hbm [shape: f32[8,256], index: 1, kind: output, shape index: {}]
  %s2 = sld [smem:[#allocation0]]
  $region18: #{tpu_custom_call.1} parent=0
    _
  %s4 = ssub.s32 1, %s2
  %s5 = scalar_select 0, %s4, %s2
  $region1: #{tpu_custom_call.1} parent=0
    #allocation2 [shape = 'u8[8192]{0}', space=vmem, size = 0x2000, scoped, tag = 'input window, operand 0, single buffered']
    #allocation3 [shape = 's32[1]{0}', space=sflag, size = 0x4, scoped, tag = 'scoped memory for tpu_custom_call.1']
    #allocation4 [shape = 's32[1]{0}', space=sflag, size = 0x4, scoped, tag = 'scoped memory for tpu_custom_call.1']
    #allocation5 [shape = 'u8[8192]{0}', space=vmem, size = 0x2000, scoped, tag = 'output window, operand 0, single buffered']
    %6 = vsyncpa [#allocation3], 0
    %7 = vsyncpa [#allocation4], 0
    // Predicated region
    $region2: #{tpu_custom_call.1} parent=1 // pred_check
      _
    $region3: #{tpu_custom_call.1} parent=1 // pred_check_branch
      %9 = sbr.rel (0) target = $region5
    $region4: #{tpu_custom_call.1} parent=1 // pred_region
      %11 = vsyncadd [#allocation3], 0
      %s13 = sshll.u32 %s0, 4
      %s14 = int_to_ptr.hbm [resolvable:$true] %s13
      %s15 = sshll.u32 [#allocation2], 4
      %s16 = int_to_ptr.vmem [resolvable:$true] %s15
      %18 = dma.hbm_to_vmem [thread:$0]  %s14, 256, %s16, [#allocation3]
    $region5: #{tpu_custom_call.1} parent=1 // pred_fallthru
      _
    // Predicated region
    $region6: #{tpu_custom_call.1} parent=1 // pred_check
      _
    $region7: #{tpu_custom_call.1} parent=1 // pred_check_branch
      %20 = sbr.rel (0) target = $region9
    $region8: #{tpu_custom_call.1} parent=1 // pred_region
      %22 = dma.done [#allocation3], 256
    $region9: #{tpu_custom_call.1} parent=1 // pred_fallthru
      _
    %v23 = vld [vmem:[#allocation2] sm:$0xff]
    %v24 = vld [vmem:[#allocation2 + $0x8] sm:$0xff]
    %26 = vrot.lane.b32.xlu0 %v23, 64
    %v27 = vpop.permute.xlu0 %26
    %v29 = vmax.f32 %v23, %v27
    %v30 = vsub.f32 %v23, %v29
    %v31 = vmul.f32 %v30, 1.442695
    %v32 = vpow.pop %v31
    %34 = vrot.lane.b32.xlu0 %v29, 64
    %v35 = vpop.permute.xlu0 %34
    %v37 = vsub.f32 %v23, %v35
    %v38 = vmul.f32 %v37, 1.442695
    %v39 = vpow.pop %v38
    %41 = vrot.lane.b32.xlu0 %v39, 64
    %v42 = vpop.permute.xlu0 %41
    %v44 = vadd.f32 %v32, %v42
    %v45 = vrcp.pop %v44
    %v46 = vmul.f32 %v32, %v45
    %48 = vrot.lane.b32.xlu0 %v45, 64
    %v49 = vpop.permute.xlu0 %48
    %v51 = vmul.f32 %v39, %v49
    %53 = vrot.lane.b32.xlu0 %v24, 64
    %v54 = vpop.permute.xlu0 %53
    %v56 = vmax.f32 %v24, %v54
    %v57 = vsub.f32 %v24, %v56
    %v58 = vmul.f32 %v57, 1.442695
    %v59 = vpow.pop %v58
    %61 = vrot.lane.b32.xlu0 %v56, 64
    %v62 = vpop.permute.xlu0 %61
    %v64 = vsub.f32 %v24, %v62
    %v65 = vmul.f32 %v64, 1.442695
    %v66 = vpow.pop %v65
    %68 = vrot.lane.b32.xlu0 %v66, 64
    %v69 = vpop.permute.xlu0 %68
    %v71 = vadd.f32 %v59, %v69
    %v72 = vrcp.pop %v71
    %v73 = vmul.f32 %v59, %v72
    %75 = vrot.lane.b32.xlu0 %v72, 64
    %v76 = vpop.permute.xlu0 %75
    %v78 = vmul.f32 %v66, %v76
    %80 = vrot.lane.b32.xlu0 %v73, 64
    %v81 = vpop.permute.xlu0 %80
    %84 = vrot.lane.b32.xlu0 %v51, 64
    %v85 = vpop.permute.xlu0 %84
    %vm87 = vcmask 523264
    %v88 = vsel %vm87, %v46, %v81
    %v89 = vsel %vm87, %v85, %v78
    %90 = vst [vmem:[#allocation5] sm:$0xff] %v88
    %91 = vst [vmem:[#allocation5 + $0x8] sm:$0xff] %v89
    // Predicated region
    $region10: #{tpu_custom_call.1} parent=1 // pred_check
      _
    $region11: #{tpu_custom_call.1} parent=1 // pred_check_branch
      %93 = sbr.rel (0) target = $region13
    $region12: #{tpu_custom_call.1} parent=1 // pred_region
      %95 = vsyncadd [#allocation4], 0
      %s97 = sshll.u32 [#allocation5], 4
      %s98 = int_to_ptr.vmem [resolvable:$true] %s97
      %s99 = sshll.u32 %s1, 4
      %s100 = int_to_ptr.hbm [resolvable:$true] %s99
      %102 = dma.vmem_to_hbm [thread:$0]  %s98, 256, %s100, [#allocation4]
    $region13: #{tpu_custom_call.1} parent=1 // pred_fallthru
      _
    // Predicated region
    $region14: #{tpu_custom_call.1} parent=1 // pred_check
      _
    $region15: #{tpu_custom_call.1} parent=1 // pred_check_branch
      %104 = sbr.rel (0) target = $region17
    $region16: #{tpu_custom_call.1} parent=1 // pred_region
      %106 = dma.done [#allocation4], 256
    $region17: #{tpu_custom_call.1} parent=1 // pred_fallthru
      _
    %107 = vsyncpa [#allocation3], 1
    %108 = vsyncpa [#allocation4], 1

</llo_original>
